<compile_context>
chip_gen: v5e
topology: v5e:2x2
jax: 0.10.0
libtpu: 0.0.40
codegen_flags: <defaults>
</compile_context>

<pallas_src>
import functools

import jax
import jax.numpy as jnp
from jax.experimental import pallas as pl
from jax.experimental.pallas import tpu as pltpu

LANE = 128      # last-dim alignment (vreg lanes)
SUBLANE = 8     # second-to-last alignment (vreg sublanes, f32)


def _round_up(n, m):
    return ((n + m - 1) // m) * m


def _vmem_footprint(rows, cols, dtype):
    """Approximate VMEM bytes for a (rows, cols) buffer after (8,128) tiling."""
    d = jnp.dtype(dtype)
    return _round_up(max(rows, 1), SUBLANE) * _round_up(max(cols, 1), LANE) * d.itemsize


def mlp_kernel(x_ref, w1_ref, b1_ref, w2_ref, b2_ref, o_ref):
    # fc1 on the MXU (f32 accumulation), bias + ReLU on the VPU. The ReLU
    # intermediate stays in vregs -- no VMEM scratch round-trip.
    h = jnp.dot(x_ref[...], w1_ref[...], preferred_element_type=jnp.float32)
    h = jnp.maximum(h + b1_ref[...], 0.0)
    # fc2: cast h to the MXU input dtype (no-op for f32), accumulate in f32.
    o = jnp.dot(h.astype(w2_ref.dtype), w2_ref[...],
                preferred_element_type=jnp.float32)
    o_ref[...] = (o + b2_ref[...]).astype(o_ref.dtype)


@functools.partial(jax.jit, static_argnames=("block_batch", "compute_dtype"))
def simple_mlp(x, w1, b1, w2, b2, *, block_batch=256, compute_dtype=jnp.float32):
    """Fused fc1 -> ReLU -> fc2.

    x: (B, in_dim); w1: (in_dim, H); b1: (H,); w2: (H, out); b2: (out,).
    compute_dtype=jnp.bfloat16 feeds the MXU bf16 inputs (recommended on
    v5e/v6e/v7x when the accuracy budget allows -- pass bf16 weights to avoid a
    per-call cast); accumulation stays f32 either way.
    """
    B, in_dim = x.shape
    hidden = w1.shape[1]
    out_dim = w2.shape[1]
    out_dtype = x.dtype

    # ---- Batch tiling: bounded padding waste; >= 2 steps for v7x megacore. ----
    n_steps = max(1, pl.cdiv(B, block_batch))
    if n_steps == 1 and B >= 2 * SUBLANE:
        n_steps = 2                                   # let both v7x TCs work
    if n_steps > 1:
        tb = _round_up(pl.cdiv(B, n_steps), SUBLANE)  # (8,128)-legal tile rows
        n_steps = pl.cdiv(B, tb)                      # re-derive after rounding
        B_p = n_steps * tb
    else:
        tb, B_p = B, B                                # full-dim block: no 8-row rule

    # Only the batch axis is ever padded (cheap vs. weight traffic); padded rows
    # produce garbage that is sliced off below. Feature dims stay unpadded --
    # full-dim blocks on x/out, whole-array resident weights.
    x_c = x if x.dtype == compute_dtype else x.astype(compute_dtype)
    if B_p != B:
        x_c = jnp.zeros((B_p, in_dim), compute_dtype).at[:B, :].set(x_c)

    w1_c = w1 if w1.dtype == compute_dtype else w1.astype(compute_dtype)
    w2_c = w2 if w2.dtype == compute_dtype else w2.astype(compute_dtype)
    b1_c = b1.astype(jnp.float32).reshape(1, hidden)   # bias adds stay f32 (VPU)
    b2_c = b2.astype(jnp.float32).reshape(1, out_dim)

    # ---- Real VMEM budget: 2x pipelined x/o tiles + single resident weights. ----
    # TODO(synk): for very large hidden dims (resident w1/w2 approaching the v7x
    # 64 MiB VMEM) add a hidden-dim "arbitrary" grid axis with a pl.when-guarded
    # accumulator instead of fully resident weights.
    vmem_needed = (
        2 * _vmem_footprint(tb, in_dim, compute_dtype)       # x tile, double-buffered
        + 2 * _vmem_footprint(tb, out_dim, out_dtype)        # o tile, double-buffered
        + _vmem_footprint(in_dim, hidden, compute_dtype)     # w1, single resident copy
        + _vmem_footprint(hidden, out_dim, compute_dtype)    # w2
        + _vmem_footprint(1, hidden, jnp.float32)            # b1
        + _vmem_footprint(1, out_dim, jnp.float32)           # b2
        + _vmem_footprint(tb, hidden, jnp.float32)           # h (vregs / Mosaic temps)
    )
    vmem_limit = int(min(max(2 * vmem_needed + (4 << 20), 32 << 20), 64 << 20))

    # Cost estimate from true (unpadded) dims.
    c_item = jnp.dtype(compute_dtype).itemsize
    cost = pl.CostEstimate(
        flops=2 * B * (in_dim * hidden + hidden * out_dim),
        transcendentals=0,
        bytes_accessed=(B * in_dim + in_dim * hidden + hidden * out_dim) * c_item
        + (hidden + out_dim) * 4
        + B * out_dim * jnp.dtype(out_dtype).itemsize,
    )

    out_padded = pl.pallas_call(
        mlp_kernel,
        out_shape=jax.ShapeDtypeStruct((B_p, out_dim), out_dtype),
        grid=(n_steps,),
        in_specs=[
            pl.BlockSpec((tb, in_dim), lambda i: (i, 0)),             # x: batch-tiled
            pl.BlockSpec(memory_space=pltpu.MemorySpace.VMEM),        # w1 resident
            pl.BlockSpec(memory_space=pltpu.MemorySpace.VMEM),        # b1 resident
            pl.BlockSpec(memory_space=pltpu.MemorySpace.VMEM),        # w2 resident
            pl.BlockSpec(memory_space=pltpu.MemorySpace.VMEM),        # b2 resident
        ],
        out_specs=pl.BlockSpec((tb, out_dim), lambda i: (i, 0)),
        compiler_params=pltpu.CompilerParams(
            dimension_semantics=("parallel",),
            vmem_limit_bytes=vmem_limit,
        ),
        cost_estimate=cost,
    )(x_c, w1_c, b1_c, w2_c, b2_c)

    return out_padded if B_p == B else out_padded[:B, :]


def reference_mlp(x, w1, b1, w2, b2):
    h = jnp.maximum(x @ w1 + b1, 0.0)
    return h @ w2 + b2


if __name__ == "__main__":
    # Shapes consistent with SimpleMLP's forward (hidden_dim = 50 as in the
    # module); odd, non-128 feature dims exercise the unpadded full-dim block
    # path; block_batch=16 exercises the multi-step batch grid.
    batch, in_dim, hidden_dim, out_dim = 64, 16, 50, 10

    key = jax.random.PRNGKey(0)
    kx, kw1, kb1, kw2, kb2 = jax.random.split(key, 5)

    x = jax.random.normal(kx, (batch, in_dim), dtype=jnp.float32)
    # Deterministic "PyTorch-like" uniform init (synthetic, not a checkpoint).
    bound1 = 1.0 / (in_dim ** 0.5)
    bound2 = 1.0 / (hidden_dim ** 0.5)
    w1 = jax.random.uniform(kw1, (in_dim, hidden_dim), jnp.float32, -bound1, bound1)
    b1 = jax.random.uniform(kb1, (hidden_dim,), jnp.float32, -bound1, bound1)
    w2 = jax.random.uniform(kw2, (hidden_dim, out_dim), jnp.float32, -bound2, bound2)
    b2 = jax.random.uniform(kb2, (out_dim,), jnp.float32, -bound2, bound2)

    ref = reference_mlp(x, w1, b1, w2, b2)

    # Multi-step batch grid (4 steps of 16 rows).
    out = jax.block_until_ready(simple_mlp(x, w1, b1, w2, b2, block_batch=16))
    assert out.shape == (batch, out_dim)
    assert jnp.allclose(out, ref, atol=1e-5, rtol=1e-5)

    # Default block_batch path (forced 2-step grid for megacore, no batch pad).
    out2 = jax.block_until_ready(simple_mlp(x, w1, b1, w2, b2))
    assert jnp.allclose(out2, ref, atol=1e-5, rtol=1e-5)

    # bf16 MXU path (recommended on v5e/v6e/v7x) -- looser tolerance (bf16 inputs).
    out_bf16 = jax.block_until_ready(
        simple_mlp(x, w1, b1, w2, b2, block_batch=16, compute_dtype=jnp.bfloat16))
    assert jnp.allclose(out_bf16, ref, atol=5e-2, rtol=5e-2)

    print("KERNEL_OK")
</pallas_src>

<mosaic_0001>
module attributes {stable_mosaic.version = 11 : i64} {
  func.func @mlp_kernel(%arg0: i32, %arg1: memref<16x16xf32, #tpu.memory_space<vmem>>, %arg2: memref<16x50xf32, #tpu.memory_space<vmem>>, %arg3: memref<1x50xf32, #tpu.memory_space<vmem>>, %arg4: memref<50x10xf32, #tpu.memory_space<vmem>>, %arg5: memref<1x10xf32, #tpu.memory_space<vmem>>, %arg6: memref<16x10xf32, #tpu.memory_space<vmem>>) attributes {dimension_semantics = [#tpu.dimension_semantics<parallel>], iteration_bounds = array<i64: 4>, scalar_prefetch = 0 : i64, scratch_operands = 0 : i64, tpu.core_type = #tpu.core_type<tc>, window_params = [{transform_indices = @transform_0, window_bounds = array<i64: 16, 16>}, {pipeline_mode = #tpu.pipeline_mode<synchronous>, transform_indices = @transform_1, window_bounds = array<i64: 16, 50>}, {pipeline_mode = #tpu.pipeline_mode<synchronous>, transform_indices = @transform_2, window_bounds = array<i64: 1, 50>}, {pipeline_mode = #tpu.pipeline_mode<synchronous>, transform_indices = @transform_3, window_bounds = array<i64: 50, 10>}, {pipeline_mode = #tpu.pipeline_mode<synchronous>, transform_indices = @transform_4, window_bounds = array<i64: 1, 10>}, {transform_indices = @transform_5, window_bounds = array<i64: 16, 10>}]} {
    %c0 = arith.constant 0 : index
    %c0_0 = arith.constant 0 : index
    %0 = vector.load %arg1[%c0, %c0_0] : memref<16x16xf32, #tpu.memory_space<vmem>>, vector<16x16xf32>
    %c0_1 = arith.constant 0 : index
    %c0_2 = arith.constant 0 : index
    %1 = vector.load %arg2[%c0_1, %c0_2] : memref<16x50xf32, #tpu.memory_space<vmem>>, vector<16x50xf32>
    %cst = arith.constant dense<0.000000e+00> : vector<16x50xf32>
    %2 = tpu.matmul %0, %1, %cst {dimension_numbers = #tpu.dot_dimension_numbers<[1], [0], [0], [1], [0, 0, 1, 1], [], []>} : vector<16x16xf32>, vector<16x50xf32>, vector<16x50xf32> -> vector<16x50xf32>
    %c0_3 = arith.constant 0 : index
    %c0_4 = arith.constant 0 : index
    %3 = vector.load %arg3[%c0_3, %c0_4] : memref<1x50xf32, #tpu.memory_space<vmem>>, vector<1x50xf32>
    %4 = vector.broadcast %3 : vector<1x50xf32> to vector<16x50xf32>
    %5 = arith.addf %2, %4 : vector<16x50xf32>
    %cst_5 = arith.constant 0.000000e+00 : f32
    %6 = vector.broadcast %cst_5 : f32 to vector<16x50xf32>
    %7 = arith.maximumf %5, %6 : vector<16x50xf32>
    %c0_6 = arith.constant 0 : index
    %c0_7 = arith.constant 0 : index
    %8 = vector.load %arg4[%c0_6, %c0_7] : memref<50x10xf32, #tpu.memory_space<vmem>>, vector<50x10xf32>
    %cst_8 = arith.constant dense<0.000000e+00> : vector<16x10xf32>
    %9 = tpu.matmul %7, %8, %cst_8 {dimension_numbers = #tpu.dot_dimension_numbers<[1], [0], [0], [1], [0, 0, 1, 1], [], []>} : vector<16x50xf32>, vector<50x10xf32>, vector<16x10xf32> -> vector<16x10xf32>
    %c0_9 = arith.constant 0 : index
    %c0_10 = arith.constant 0 : index
    %10 = vector.load %arg5[%c0_9, %c0_10] : memref<1x10xf32, #tpu.memory_space<vmem>>, vector<1x10xf32>
    %11 = vector.broadcast %10 : vector<1x10xf32> to vector<16x10xf32>
    %12 = arith.addf %9, %11 : vector<16x10xf32>
    %c0_11 = arith.constant 0 : index
    %c0_12 = arith.constant 0 : index
    %13 = vector.load %arg6[%c0_11, %c0_12] : memref<16x10xf32, #tpu.memory_space<vmem>>, vector<16x10xf32>
    tpu.vector_store %arg6[%c0_11, %c0_12], %12 {strides = array<i32>} : memref<16x10xf32, #tpu.memory_space<vmem>>, vector<16x10xf32>,
    return
  }
  func.func @transform_0(%arg0: i32) -> (i32, i32) {
    %c0_i32 = arith.constant 0 : i32
    %c0_i32_0 = arith.constant 0 : i32
    return %arg0, %c0_i32 : i32, i32
  }
  func.func @transform_1(%arg0: i32) -> (i32, i32) {
    %c0_i32 = arith.constant 0 : i32
    %c0_i32_0 = arith.constant 0 : i32
    %c0_i32_1 = arith.constant 0 : i32
    return %c0_i32, %c0_i32_0 : i32, i32
  }
  func.func @transform_2(%arg0: i32) -> (i32, i32) {
    %c0_i32 = arith.constant 0 : i32
    %c0_i32_0 = arith.constant 0 : i32
    %c0_i32_1 = arith.constant 0 : i32
    return %c0_i32, %c0_i32_0 : i32, i32
  }
  func.func @transform_3(%arg0: i32) -> (i32, i32) {
    %c0_i32 = arith.constant 0 : i32
    %c0_i32_0 = arith.constant 0 : i32
    %c0_i32_1 = arith.constant 0 : i32
    return %c0_i32, %c0_i32_0 : i32, i32
  }
  func.func @transform_4(%arg0: i32) -> (i32, i32) {
    %c0_i32 = arith.constant 0 : i32
    %c0_i32_0 = arith.constant 0 : i32
    %c0_i32_1 = arith.constant 0 : i32
    return %c0_i32, %c0_i32_0 : i32, i32
  }
  func.func @transform_5(%arg0: i32) -> (i32, i32) {
    %c0_i32 = arith.constant 0 : i32
    %c0_i32_0 = arith.constant 0 : i32
    return %arg0, %c0_i32 : i32, i32
  }
}

</mosaic_0001>

<llo_original>
// kernel: simple_mlp.1
$region0: #{simple_mlp.1}
  #allocation0 [shape = 'u32[]', space=smem, size = 0x4, offset = 0x4, fixed_abs, tag = 'smem constant byte address 0x4 - core index']
  #allocation1 [shape = 'u32[72,128]{1,0:T(1,128)}', space=vmem, size = 0x9000, scoped, tag = 'internal scratch']
  %s0 = inlined_call_operand.vmem [shape: f32[64,16], index: 0, kind: input, shape index: {}]
  %s1 = inlined_call_operand.vmem [shape: f32[16,50], index: 1, kind: input, shape index: {}]
  %s2 = inlined_call_operand.vmem [shape: f32[1,50], index: 2, kind: input, shape index: {}]
  %s3 = inlined_call_operand.vmem [shape: f32[50,10], index: 3, kind: input, shape index: {}]
  %s4 = inlined_call_operand.vmem [shape: f32[1,10], index: 4, kind: input, shape index: {}]
  %s5 = inlined_call_operand.vmem [shape: f32[64,10], index: 5, kind: output, shape index: {}]
  %s6 = sld [smem:[#allocation0]]
  $region53: #{simple_mlp.1} parent=0
    _
  %s8 = ssub.s32 1, %s6
  %s9 = scalar_select 0, %s8, %s6
  loop: start=0, step=1, limit=6
  $region2: #{simple_mlp.1} parent=0 // loop_pre_header
    _
  $region3: #{simple_mlp.1} parent=0 // loop_header
    %s11 = sphi 0, %s15
    %p12 = scmp.ge.s32.totalorder %s11, 6
    %s21 = sphi 0, %s23
    %s24 = sphi 0, %s21
    %s25 = sphi 0, %s24
    %s41 = sphi 0, %s25
    %s45 = sphi 0, %s45
    %s47 = sphi 0, %s45
    %s48 = sphi 0, %s47
    %s62 = sphi 0, %s48
    %s66 = sphi 0, %s66
    %s68 = sphi 0, %s66
    %s69 = sphi 0, %s68
    %s83 = sphi 0, %s69
    %s87 = sphi 0, %s87
    %s89 = sphi 0, %s87
    %s90 = sphi 0, %s89
    %s104 = sphi 0, %s90
    %s108 = sphi 0, %s108
    %s110 = sphi 0, %s108
    %s111 = sphi 0, %s110
    %s125 = sphi 0, %s111
    %s131 = sphi 0, %s133
    %s134 = sphi 0, %s131
    %s135 = sphi 0, %s134
    %s151 = sphi 0, %s135
  $region4: #{simple_mlp.1} parent=0 // loop_header_branch
    %14 = sbr.rel (%p12) target = $region8
  $region5: #{simple_mlp.1} parent=0 // loop_body
    %s16 = ssub.s32 %s11, 1
    %s17 = ssub.s32 %s11, 2
    %s18 = sadd.s32 %s11, 1
    %s19 = ssub.s32 %s11, %s18
    %p20 = scmp.eq.s32.totalorder %s19, 0
    %s22 = sadd.s32 %s21, 1
    %s23 = scalar_select %p20, %s21, %s22
    %p26 = pneg %p20
    %p27 = scmp.eq.s32.totalorder %s11, 3
    %p28 = por %p26, %p27
    %p29 = scmp.ne.s32.totalorder %s21, %s24
    %p30 = scmp.eq.s32.totalorder %s11, 0
    %p31 = por %p29, %p30
    %p32 = scmp.ne.s32.totalorder %s21, %s24
    %p33 = scmp.eq.s32.totalorder %s16, 3
    %p34 = por %p32, %p33
    %p35 = scmp.ne.s32.totalorder %s24, %s25
    %p36 = scmp.eq.s32.totalorder %s16, 0
    %p37 = por %p35, %p36
    %p38 = scmp.ne.s32.totalorder %s24, %s25
    %p39 = scmp.eq.s32.totalorder %s17, 3
    %p40 = por %p38, %p39
    %p42 = scmp.ne.s32.totalorder %s25, %s41
    %p43 = scmp.eq.s32.totalorder %s17, 0
    %p44 = por %p42, %p43
    %s46 = sadd.s32 %s45, 1
    %p49 = scmp.eq.s32.totalorder %s11, 3
    %p50 = scmp.ne.s32.totalorder %s45, %s47
    %p51 = scmp.eq.s32.totalorder %s11, 0
    %p52 = por %p50, %p51
    %p53 = scmp.ne.s32.totalorder %s45, %s47
    %p54 = scmp.eq.s32.totalorder %s16, 3
    %p55 = por %p53, %p54
    %p56 = scmp.ne.s32.totalorder %s47, %s48
    %p57 = scmp.eq.s32.totalorder %s16, 0
    %p58 = por %p56, %p57
    %p59 = scmp.ne.s32.totalorder %s47, %s48
    %p60 = scmp.eq.s32.totalorder %s17, 3
    %p61 = por %p59, %p60
    %p63 = scmp.ne.s32.totalorder %s48, %s62
    %p64 = scmp.eq.s32.totalorder %s17, 0
    %p65 = por %p63, %p64
    %s67 = sadd.s32 %s66, 1
    %p70 = scmp.eq.s32.totalorder %s11, 3
    %p71 = scmp.ne.s32.totalorder %s66, %s68
    %p72 = scmp.eq.s32.totalorder %s11, 0
    %p73 = por %p71, %p72
    %p74 = scmp.ne.s32.totalorder %s66, %s68
    %p75 = scmp.eq.s32.totalorder %s16, 3
    %p76 = por %p74, %p75
    %p77 = scmp.ne.s32.totalorder %s68, %s69
    %p78 = scmp.eq.s32.totalorder %s16, 0
    %p79 = por %p77, %p78
    %p80 = scmp.ne.s32.totalorder %s68, %s69
    %p81 = scmp.eq.s32.totalorder %s17, 3
    %p82 = por %p80, %p81
    %p84 = scmp.ne.s32.totalorder %s69, %s83
    %p85 = scmp.eq.s32.totalorder %s17, 0
    %p86 = por %p84, %p85
    %s88 = sadd.s32 %s87, 1
    %p91 = scmp.eq.s32.totalorder %s11, 3
    %p92 = scmp.ne.s32.totalorder %s87, %s89
    %p93 = scmp.eq.s32.totalorder %s11, 0
    %p94 = por %p92, %p93
    %p95 = scmp.ne.s32.totalorder %s87, %s89
    %p96 = scmp.eq.s32.totalorder %s16, 3
    %p97 = por %p95, %p96
    %p98 = scmp.ne.s32.totalorder %s89, %s90
    %p99 = scmp.eq.s32.totalorder %s16, 0
    %p100 = por %p98, %p99
    %p101 = scmp.ne.s32.totalorder %s89, %s90
    %p102 = scmp.eq.s32.totalorder %s17, 3
    %p103 = por %p101, %p102
    %p105 = scmp.ne.s32.totalorder %s90, %s104
    %p106 = scmp.eq.s32.totalorder %s17, 0
    %p107 = por %p105, %p106
    %s109 = sadd.s32 %s108, 1
    %p112 = scmp.eq.s32.totalorder %s11, 3
    %p113 = scmp.ne.s32.totalorder %s108, %s110
    %p114 = scmp.eq.s32.totalorder %s11, 0
    %p115 = por %p113, %p114
    %p116 = scmp.ne.s32.totalorder %s108, %s110
    %p117 = scmp.eq.s32.totalorder %s16, 3
    %p118 = por %p116, %p117
    %p119 = scmp.ne.s32.totalorder %s110, %s111
    %p120 = scmp.eq.s32.totalorder %s16, 0
    %p121 = por %p119, %p120
    %p122 = scmp.ne.s32.totalorder %s110, %s111
    %p123 = scmp.eq.s32.totalorder %s17, 3
    %p124 = por %p122, %p123
    %p126 = scmp.ne.s32.totalorder %s111, %s125
    %p127 = scmp.eq.s32.totalorder %s17, 0
    %p128 = por %p126, %p127
    %s129 = ssub.s32 %s11, %s18
    %p130 = scmp.eq.s32.totalorder %s129, 0
    %s132 = sadd.s32 %s131, 1
    %s133 = scalar_select %p130, %s131, %s132
    %p136 = pneg %p130
    %p137 = scmp.eq.s32.totalorder %s11, 3
    %p138 = por %p136, %p137
    %p139 = scmp.ne.s32.totalorder %s131, %s134
    %p140 = scmp.eq.s32.totalorder %s11, 0
    %p141 = por %p139, %p140
    %p142 = scmp.ne.s32.totalorder %s131, %s134
    %p143 = scmp.eq.s32.totalorder %s16, 3
    %p144 = por %p142, %p143
    %p145 = scmp.ne.s32.totalorder %s134, %s135
    %p146 = scmp.eq.s32.totalorder %s16, 0
    %p147 = por %p145, %p146
    %p148 = scmp.ne.s32.totalorder %s134, %s135
    %p149 = scmp.eq.s32.totalorder %s17, 3
    %p150 = por %p148, %p149
    %p152 = scmp.ne.s32.totalorder %s135, %s151
    %p153 = scmp.eq.s32.totalorder %s17, 0
    %p154 = por %p152, %p153
    %p155 = scmp.le.s32.totalorder 1, %s11
    %p156 = scmp.lt.s32.totalorder %s11, 5
    %p157 = pnand %p155, %p156
    %p158 = pneg %p157
    // Predicated region
    $region9: #{simple_mlp.1} parent=5 // pred_check
      _
    $region10: #{simple_mlp.1} parent=5 // pred_check_branch
      %160 = sbr.rel (%p157) target = $region12
    $region11: #{simple_mlp.1} parent=5 // pred_region
      %s161 = ssub.s32 %s11, 1
      // Predicated region
      $region13: #{simple_mlp.1} parent=11 // pred_check
        %p162 = pneg %p58
      $region14: #{simple_mlp.1} parent=11 // pred_check_branch
        %164 = sbr.rel (%p162) target = $region16
      $region15: #{simple_mlp.1} parent=11 // pred_region
        _
      $region16: #{simple_mlp.1} parent=11 // pred_fallthru
        _
      // Predicated region
      $region17: #{simple_mlp.1} parent=11 // pred_check
        %p165 = pneg %p79
      $region18: #{simple_mlp.1} parent=11 // pred_check_branch
        %167 = sbr.rel (%p165) target = $region20
      $region19: #{simple_mlp.1} parent=11 // pred_region
        _
      $region20: #{simple_mlp.1} parent=11 // pred_fallthru
        _
      // Predicated region
      $region21: #{simple_mlp.1} parent=11 // pred_check
        %p168 = pneg %p100
      $region22: #{simple_mlp.1} parent=11 // pred_check_branch
        %170 = sbr.rel (%p168) target = $region24
      $region23: #{simple_mlp.1} parent=11 // pred_region
        _
      $region24: #{simple_mlp.1} parent=11 // pred_fallthru
        _
      // Predicated region
      $region25: #{simple_mlp.1} parent=11 // pred_check
        %p171 = pneg %p121
      $region26: #{simple_mlp.1} parent=11 // pred_check_branch
        %173 = sbr.rel (%p171) target = $region28
      $region27: #{simple_mlp.1} parent=11 // pred_region
        _
      $region28: #{simple_mlp.1} parent=11 // pred_fallthru
        _
    $region12: #{simple_mlp.1} parent=5 // pred_fallthru
      _
    %p174 = scmp.lt.s32.totalorder %s11, 4
    // Predicated region
    $region29: #{simple_mlp.1} parent=5 // pred_check
      %p175 = pneg %p174
    $region30: #{simple_mlp.1} parent=5 // pred_check_branch
      %177 = sbr.rel (%p175) target = $region32
    $region31: #{simple_mlp.1} parent=5 // pred_region
      // Predicated region
      $region33: #{simple_mlp.1} parent=31 // pred_check
        %p178 = pneg %p31
      $region34: #{simple_mlp.1} parent=31 // pred_check_branch
        %180 = sbr.rel (%p178) target = $region36
      $region35: #{simple_mlp.1} parent=31 // pred_region
        %s181 = smul.u32 2, %s11
        %p182 = scmp.lt.s32.totalorder %s181, 7
        %s183 = scalar_select %p182, %s181, 7
        %s184 = smul.addr %s183, 8
        %s185 = scalar_lea.vmem %s0, %s184
        %s186 = smul.u32 2, %s11
      $region36: #{simple_mlp.1} parent=31 // pred_fallthru
        _
    $region32: #{simple_mlp.1} parent=5 // pred_fallthru
      _
    %p187 = scmp.le.s32.totalorder 1, %s11
    %p188 = scmp.lt.s32.totalorder %s11, 5
    %p189 = pnand %p187, %p188
    %p190 = pneg %p189
    // Predicated region
    $region37: #{simple_mlp.1} parent=5 // pred_check
      _
    $region38: #{simple_mlp.1} parent=5 // pred_check_branch
      %192 = sbr.rel (%p189) target = $region40
    $region39: #{simple_mlp.1} parent=5 // pred_region
      %s193 = ssub.s32 %s11, 1
      %s194 = smul.u32 2, %s16
      %p195 = scmp.lt.s32.totalorder %s194, 7
      %s196 = scalar_select %p195, %s194, 7
      %s197 = smul.addr %s196, 8
      %s198 = scalar_lea.vmem %s0, %s197
      %p199 = pneg %p37
      %p200 = pneg %p34
      %p201 = pneg %p58
      %p202 = pneg %p55
      %p203 = pneg %p79
      %p204 = pneg %p76
      %p205 = pneg %p100
      %p206 = pneg %p97
      %p207 = pneg %p121
      %p208 = pneg %p118
      %p209 = pneg %p147
      %p210 = pneg %p144
      %s211 = smul.u32 2, %s16
      %p212 = scmp.lt.s32.totalorder %s211, 7
      %s213 = scalar_select %p212, %s211, 7
      %s214 = smul.addr %s213, 8
      %s215 = scalar_lea.vmem %s5, %s214
      %s216 = smul.u32 2, %s16
      %p217 = scmp.lt.s32.totalorder %s216, 7
      %s218 = scalar_select %p217, %s216, 7
      %s219 = smul.addr %s218, 8
      %s220 = scalar_lea.vmem %s0, %s219
      %s221 = smul.u32 2, %s16
      %s222 = smul.u32 2, %s16
      %p223 = scmp.lt.s32.totalorder %s222, 7
      %s224 = scalar_select %p223, %s222, 7
      %s225 = smul.addr %s224, 8
      %s226 = scalar_lea.vmem %s5, %s225
      %s227 = smul.u32 2, %s16
      %v228 = vld [vmem:[%s220] sm:$0xff]
      %v229 = vld [vmem:[%s220 + $0x8] sm:$0xff]
      %v230 = vld [vmem:[%s1] sm:$0xff]
      %v231 = vld [vmem:[%s1 + $0x8] sm:$0xff]
      %v232 = vld [vmem:[%s2] sm:$0x1]
      %v234 = vperm.slane %v232, 0
      %vm236 = vcmask 130048
      %v238 = vsel %vm236, %v228, 0
      %v241 = vsel %vm236, %v229, 0
      %243 = vmatpush.msra.mxu0 0.0
      %244 = vmatpush.msra.mxu0 0.0
      %245 = vmatpush.msra.mxu0 0.0
      %246 = vmatpush.msra.mxu0 0.0
      %247 = vmatpush.msra.mxu0 0.0
      %248 = vmatpush.msra.mxu0 0.0
      %249 = vmatpush.msra.mxu0 0.0
      %250 = vmatpush.msra.mxu0 0.0
      %251 = vmatpush.msra.mxu0 0.0
      %252 = vmatpush.msra.mxu0 0.0
      %253 = vmatpush.msra.mxu0 0.0
      %254 = vmatpush.msra.mxu0 0.0
      %255 = vmatpush.msra.mxu0 0.0
      %256 = vmatpush.msra.mxu0 0.0
      %257 = vmatpush.msra.mxu0 %v231
      %258 = vmatpush.msra.mxu0 %v230
      %259 = vmatmul.f32.gmra.mxu0 %v238
      %v260 = vpop.f32.mrf.mxu0
      %v261 = vadd.f32 %v234, %v260
      %262 = vmatmul.f32.gmra.mxu0 %v241
      %v263 = vpop.f32.mrf.mxu0
      %v264 = vadd.f32 %v234, %v263
      %265 = vdwg.mxu0
      %v266 = vmax.f32 %v261, 0.0
      %v267 = vmax.f32 %v264, 0.0
      %v268 = vld [vmem:[%s3] sm:$0xff]
      %v269 = vld [vmem:[%s3 + $0x8] sm:$0xff]
      %v270 = vld [vmem:[%s3 + $0x10] sm:$0xff]
      %v271 = vld [vmem:[%s3 + $0x18] sm:$0xff]
      %v272 = vld [vmem:[%s3 + $0x20] sm:$0xff]
      %v273 = vld [vmem:[%s3 + $0x28] sm:$0xff]
      %v274 = vld [vmem:[%s3 + $0x30] sm:$0x3]
      %v275 = vld [vmem:[%s4] sm:$0x1]
      %v277 = vperm.slane %v275, 0
      %vm279 = vcmask 408576
      %v281 = vsel %vm279, %v266, 0
      %v284 = vsel %vm279, %v267, 0
      %vm286 = vcmask 1041408
      %v288 = vsel %vm286, %v274, 0
      %290 = vmatpush.msra.mxu0 0.0
      %291 = vmatpush.msra.mxu0 0.0
      %292 = vmatpush.msra.mxu0 0.0
      %293 = vmatpush.msra.mxu0 0.0
      %294 = vmatpush.msra.mxu0 0.0
      %295 = vmatpush.msra.mxu0 0.0
      %296 = vmatpush.msra.mxu0 0.0
      %297 = vmatpush.msra.mxu0 0.0
      %298 = vmatpush.msra.mxu0 0.0
      %299 = vmatpush.msra.mxu0 %v288
      %300 = vmatpush.msra.mxu0 %v273
      %301 = vmatpush.msra.mxu0 %v272
      %302 = vmatpush.msra.mxu0 %v271
      %303 = vmatpush.msra.mxu0 %v270
      %304 = vmatpush.msra.mxu0 %v269
      %305 = vmatpush.msra.mxu0 %v268
      %306 = vmatmul.f32.gmra.mxu0 %v281
      %v307 = vpop.f32.mrf.mxu0
      %v308 = vadd.f32 %v277, %v307
      %309 = vmatmul.f32.gmra.mxu0 %v284
      %v310 = vpop.f32.mrf.mxu0
      %v311 = vadd.f32 %v277, %v310
      %312 = vdwg.mxu0
      %vm313 = vcmask 80896
      %314 = vst.msk [vmem:[%s226] sm:$0xff] %vm313, %v308
      %315 = vst.msk [vmem:[%s226 + $0x8] sm:$0xff] %vm313, %v311
      %s316 = smul.u32 2, %s16
      %p317 = scmp.lt.s32.totalorder %s316, 7
      %s318 = scalar_select %p317, %s316, 7
      %s319 = smul.addr %s318, 8
      %s320 = scalar_lea.vmem %s5, %s319
      // Predicated region
      $region41: #{simple_mlp.1} parent=39 // pred_check
        %p321 = pneg %p144
      $region42: #{simple_mlp.1} parent=39 // pred_check_branch
        %323 = sbr.rel (%p321) target = $region44
      $region43: #{simple_mlp.1} parent=39 // pred_region
        %s324 = smul.u32 2, %s16
      $region44: #{simple_mlp.1} parent=39 // pred_fallthru
        _
    $region40: #{simple_mlp.1} parent=5 // pred_fallthru
      _
    %p325 = scmp.le.s32.totalorder 2, %s11
    // Predicated region
    $region45: #{simple_mlp.1} parent=5 // pred_check
      %p326 = pneg %p325
    $region46: #{simple_mlp.1} parent=5 // pred_check_branch
      %328 = sbr.rel (%p326) target = $region48
    $region47: #{simple_mlp.1} parent=5 // pred_region
      %s329 = ssub.s32 %s11, 2
      // Predicated region
      $region49: #{simple_mlp.1} parent=47 // pred_check
        %p330 = pneg %p150
      $region50: #{simple_mlp.1} parent=47 // pred_check_branch
        %332 = sbr.rel (%p330) target = $region52
      $region51: #{simple_mlp.1} parent=47 // pred_region
        %s333 = smul.u32 2, %s17
        %p334 = scmp.lt.s32.totalorder %s333, 7
        %s335 = scalar_select %p334, %s333, 7
        %s336 = smul.addr %s335, 8
        %s337 = scalar_lea.vmem %s5, %s336
      $region52: #{simple_mlp.1} parent=47 // pred_fallthru
        _
    $region48: #{simple_mlp.1} parent=5 // pred_fallthru
      _
  $region6: #{simple_mlp.1} parent=0 // loop_footer
    %s15 = sadd.s32 1, %s11
  $region7: #{simple_mlp.1} parent=0 // loop_footer_branch
    %10 = sbr.rel target = $region3
  $region8: #{simple_mlp.1} parent=0 // loop_exit
    _

</llo_original>
